<compile_context>
chip_gen: v7x
topology: tpu7x:2x2x1
jax: 0.10.0
libtpu: 0.0.40
codegen_flags: <defaults>
</compile_context>

<pallas_src>
import jax
import jax.numpy as jnp
from jax.experimental import pallas as pl
from jax.experimental.pallas import tpu as pltpu

_LANES = 128
_TM_MAX = 2048  # rows per block; 2048 * 128 * 4B = 1 MiB per f32 input tile


def _sublane_multiple(dtype):
    # 32-bit -> 8, 16-bit -> 16, 8-bit/bool -> 32 (sub-32-bit packs along sublanes).
    itemsize = jnp.dtype(dtype).itemsize
    return max(8, 8 * (4 // itemsize))


def _make_kernel(tm, rows_valid, ragged):
    def kernel(pred_ref, target_ref, mask_ref, out_ref):
        # (tm, 128) tiles in VMEM; accumulate partials in f32.
        p = pred_ref[...].astype(jnp.float32)
        t = target_ref[...].astype(jnp.float32)
        m = mask_ref[...].astype(jnp.float32)

        diff = p * m - t          # VPU elementwise
        sq = diff * diff

        if ragged:
            # Last block may read past the array: zero BOTH partials for OOB rows.
            row = jax.lax.broadcasted_iota(jnp.int32, (tm, _LANES), 0)
            valid = (pl.program_id(0) * tm + row) < rows_valid
            sq = jnp.where(valid, sq, 0.0)
            m = jnp.where(valid, m, 0.0)

        # Fold sublane groups with pure VPU adds; fused (16,128) partial output.
        out_ref[0:8, :] = jnp.sum(sq.reshape(tm // 8, 8, _LANES), axis=0)
        out_ref[8:16, :] = jnp.sum(m.reshape(tm // 8, 8, _LANES), axis=0)

    return kernel


def masked_mse_loss(pred, target, mask):
    """pred, target, mask: same-shape arrays. Returns scalar float32 loss."""
    assert pred.shape == target.shape == mask.shape
    n = pred.size

    sub = max(_sublane_multiple(x.dtype) for x in (pred, target, mask))
    rows = -(-n // _LANES)                     # ceil(n / 128)

    # Tile selection: cap at _TM_MAX, but keep grid >= 2 when possible so v7x's
    # two TensorCores both get work; tiny inputs collapse to one sublane group.
    if rows <= sub:
        tm = sub
    else:
        half = -(-rows // 2)
        tm = min(_TM_MAX, -(-half // sub) * sub)
    grid = -(-rows // tm)
    rows_alloc = max(rows, tm)                 # array extent actually allocated
    ragged = (rows_alloc % tm) != 0            # static: last block partially valid

    def _prep(x):
        flat = x.reshape(-1)
        pad = rows_alloc * _LANES - n
        if pad > 0:
            # Only fires when n % 128 != 0 (reshape needs it) or for tiny inputs;
            # zero padding contributes 0 to both partial sums.
            flat = jnp.pad(flat, (0, pad))
        return flat.reshape(rows_alloc, _LANES)

    p2, t2, m2 = _prep(pred), _prep(target), _prep(mask)

    in_spec = pl.BlockSpec((tm, _LANES), lambda i: (i, 0))
    out_spec = pl.BlockSpec((16, _LANES), lambda i: (i, 0))

    # Honest scheduler hint: unpadded, original-dtype bytes.
    in_bytes = sum(int(x.size) * jnp.dtype(x.dtype).itemsize
                   for x in (pred, target, mask))
    out_bytes = grid * 16 * _LANES * 4
    cost = pl.CostEstimate(flops=5 * n, transcendentals=0,
                           bytes_accessed=in_bytes + out_bytes)

    parts = pl.pallas_call(
        _make_kernel(tm, rows_alloc, ragged),
        out_shape=jax.ShapeDtypeStruct((grid * 16, _LANES), jnp.float32),
        grid=(grid,),
        in_specs=[in_spec, in_spec, in_spec],
        out_specs=out_spec,
        compiler_params=pltpu.CompilerParams(
            dimension_semantics=("parallel",),
            vmem_limit_bytes=32 * 1024 * 1024,
        ),
        cost_estimate=cost,
    )(p2, t2, m2)

    # Tiny final reduction + exact divide in plain JAX.
    parts = parts.reshape(grid, 2, 8, _LANES)
    return jnp.sum(parts[:, 0]) / jnp.sum(parts[:, 1])


def _reference(pred, target, mask):
    p = pred.astype(jnp.float32)
    t = target.astype(jnp.float32)
    m = mask.astype(jnp.float32)
    return jnp.sum((p * m - t) ** 2) / jnp.sum(m)


if __name__ == "__main__":
    key = jax.random.PRNGKey(0)
    k1, k2, k3 = jax.random.split(key, 3)

    batch, seq_len = 2, 8
    pred = jax.random.normal(k1, (batch, seq_len), dtype=jnp.float32)
    target = jax.random.normal(k2, (batch, seq_len), dtype=jnp.float32)
    # Binary mask with at least one element set (deterministic from PRNGKey(0)).
    mask = (jax.random.uniform(k3, (batch, seq_len)) > 0.3).astype(jnp.float32)

    loss = jax.jit(masked_mse_loss)(pred, target, mask)
    jax.block_until_ready(loss)

    ref = _reference(pred, target, mask)
    assert jnp.allclose(loss, ref, rtol=1e-5, atol=1e-5), (loss, ref)
    print("KERNEL_OK")
</pallas_src>

<mosaic_0001>
module attributes {stable_mosaic.version = 11 : i64} {
  func.func @kernel(%arg0: i32, %arg1: memref<8x128xf32, #tpu.memory_space<vmem>>, %arg2: memref<8x128xf32, #tpu.memory_space<vmem>>, %arg3: memref<8x128xf32, #tpu.memory_space<vmem>>, %arg4: memref<16x128xf32, #tpu.memory_space<vmem>>) attributes {dimension_semantics = [#tpu.dimension_semantics<parallel>], iteration_bounds = array<i64: 1>, scalar_prefetch = 0 : i64, scratch_operands = 0 : i64, tpu.core_type = #tpu.core_type<tc>, window_params = [{transform_indices = @transform_0, window_bounds = array<i64: 8, 128>}, {transform_indices = @transform_1, window_bounds = array<i64: 8, 128>}, {transform_indices = @transform_2, window_bounds = array<i64: 8, 128>}, {transform_indices = @transform_3, window_bounds = array<i64: 16, 128>}]} {
    %c0 = arith.constant 0 : index
    %c0_0 = arith.constant 0 : index
    %0 = vector.load %arg1[%c0, %c0_0] : memref<8x128xf32, #tpu.memory_space<vmem>>, vector<8x128xf32>
    %c0_1 = arith.constant 0 : index
    %c0_2 = arith.constant 0 : index
    %1 = vector.load %arg2[%c0_1, %c0_2] : memref<8x128xf32, #tpu.memory_space<vmem>>, vector<8x128xf32>
    %c0_3 = arith.constant 0 : index
    %c0_4 = arith.constant 0 : index
    %2 = vector.load %arg3[%c0_3, %c0_4] : memref<8x128xf32, #tpu.memory_space<vmem>>, vector<8x128xf32>
    %3 = arith.mulf %0, %2 : vector<8x128xf32>
    %4 = arith.subf %3, %1 : vector<8x128xf32>
    %5 = arith.mulf %4, %4 : vector<8x128xf32>
    %6 = vector.shape_cast %5 : vector<8x128xf32> to vector<1x8x128xf32>
    %cst = arith.constant dense<0.000000e+00> : vector<8x128xf32>
    %7 = vector.multi_reduction <add>, %6, %cst [0] : vector<1x8x128xf32> to vector<8x128xf32>
    %c0_5 = arith.constant 0 : index
    %c0_6 = arith.constant 0 : index
    %8 = vector.load %arg4[%c0_5, %c0_6] : memref<16x128xf32, #tpu.memory_space<vmem>>, vector<8x128xf32>
    tpu.vector_store %arg4[%c0_5, %c0_6], %7 {strides = array<i32>} : memref<16x128xf32, #tpu.memory_space<vmem>>, vector<8x128xf32>,
    %9 = vector.shape_cast %2 : vector<8x128xf32> to vector<1x8x128xf32>
    %cst_7 = arith.constant dense<0.000000e+00> : vector<8x128xf32>
    %10 = vector.multi_reduction <add>, %9, %cst_7 [0] : vector<1x8x128xf32> to vector<8x128xf32>
    %c8 = arith.constant 8 : index
    %c0_8 = arith.constant 0 : index
    %11 = vector.load %arg4[%c8, %c0_8] : memref<16x128xf32, #tpu.memory_space<vmem>>, vector<8x128xf32>
    tpu.vector_store %arg4[%c8, %c0_8], %10 {strides = array<i32>} : memref<16x128xf32, #tpu.memory_space<vmem>>, vector<8x128xf32>,
    return
  }
  func.func @transform_0(%arg0: i32) -> (i32, i32) {
    %c0_i32 = arith.constant 0 : i32
    %c0_i32_0 = arith.constant 0 : i32
    return %arg0, %c0_i32 : i32, i32
  }
  func.func @transform_1(%arg0: i32) -> (i32, i32) {
    %c0_i32 = arith.constant 0 : i32
    %c0_i32_0 = arith.constant 0 : i32
    return %arg0, %c0_i32 : i32, i32
  }
  func.func @transform_2(%arg0: i32) -> (i32, i32) {
    %c0_i32 = arith.constant 0 : i32
    %c0_i32_0 = arith.constant 0 : i32
    return %arg0, %c0_i32 : i32, i32
  }
  func.func @transform_3(%arg0: i32) -> (i32, i32) {
    %c0_i32 = arith.constant 0 : i32
    %c0_i32_0 = arith.constant 0 : i32
    return %arg0, %c0_i32 : i32, i32
  }
}

</mosaic_0001>

<llo_original>
// kernel: masked_mse_loss.1
$region0: #{masked_mse_loss.1}
  #allocation0 [shape = 'u32[]', space=smem, size = 0x4, offset = 0x4, fixed_abs, tag = 'smem constant byte address 0x4 - core index']
  #allocation1 [shape = 'u32[144,128]{1,0:T(1,128)}', space=vmem, size = 0x12000, scoped, tag = 'internal scratch']
  %s0 = inlined_call_operand.vmem [shape: f32[8,128], index: 0, kind: input, shape index: {}]
  %s1 = inlined_call_operand.vmem [shape: f32[8,128], index: 1, kind: input, shape index: {}]
  %s2 = inlined_call_operand.vmem [shape: f32[8,128], index: 2, kind: input, shape index: {}]
  %s3 = inlined_call_operand.vmem [shape: f32[16,128], index: 3, kind: output, shape index: {}]
  %s4 = sld [smem:[#allocation0]]
  $region22: #{masked_mse_loss.1} parent=0
    _
  %s6 = ssub.s32 1, %s4
  %s7 = scalar_select 0, %s6, %s4
  // Predicated region
  $region2: #{masked_mse_loss.1} parent=0 // pred_check
    _
  $region3: #{masked_mse_loss.1} parent=0 // pred_check_branch
    %9 = sbr.rel (0) target = $region5
  $region4: #{masked_mse_loss.1} parent=0 // pred_region
    _
  $region5: #{masked_mse_loss.1} parent=0 // pred_fallthru
    _
  // Predicated region
  $region6: #{masked_mse_loss.1} parent=0 // pred_check
    _
  $region7: #{masked_mse_loss.1} parent=0 // pred_check_branch
    %11 = sbr.rel (0) target = $region9
  $region8: #{masked_mse_loss.1} parent=0 // pred_region
    _
  $region9: #{masked_mse_loss.1} parent=0 // pred_fallthru
    _
  // Predicated region
  $region10: #{masked_mse_loss.1} parent=0 // pred_check
    _
  $region11: #{masked_mse_loss.1} parent=0 // pred_check_branch
    %13 = sbr.rel (0) target = $region13
  $region12: #{masked_mse_loss.1} parent=0 // pred_region
    _
  $region13: #{masked_mse_loss.1} parent=0 // pred_fallthru
    _
  %v14 = vld [vmem:[%s0] sm:$0xff]
  %v15 = vld [vmem:[%s1] sm:$0xff]
  %v16 = vld [vmem:[%s2] sm:$0xff]
  %v17 = vmul.f32 %v14, %v16
  %v18 = vsub.f32 %v17, %v15
  %v19 = vmul.f32 %v18, %v18
  %v20 = vadd.f32 %v19, 0.0
  %21 = vst [vmem:[%s3] sm:$0xff] %v20
  %v22 = vadd.f32 %v16, 0.0
  %23 = vst [vmem:[%s3 + $0x8] sm:$0xff] %v22
  // Predicated region
  $region14: #{masked_mse_loss.1} parent=0 // pred_check
    _
  $region15: #{masked_mse_loss.1} parent=0 // pred_check_branch
    %25 = sbr.rel (0) target = $region17
  $region16: #{masked_mse_loss.1} parent=0 // pred_region
    _
  $region17: #{masked_mse_loss.1} parent=0 // pred_fallthru
    _
  // Predicated region
  $region18: #{masked_mse_loss.1} parent=0 // pred_check
    _
  $region19: #{masked_mse_loss.1} parent=0 // pred_check_branch
    %27 = sbr.rel (0) target = $region21
  $region20: #{masked_mse_loss.1} parent=0 // pred_region
    _
  $region21: #{masked_mse_loss.1} parent=0 // pred_fallthru
    _

</llo_original>
